<compile_context>
chip_gen: v5e
topology: v5e:2x2
jax: 0.10.0
libtpu: 0.0.40
codegen_flags: <defaults>
</compile_context>

<pallas_src>
import functools

import jax
import jax.numpy as jnp
from jax.experimental import pallas as pl
from jax.experimental.pallas import tpu as pltpu

_LANE = 128
_SUBLANE = 8
_TB_MAX = 256  # batch-tile rows (multiple of 8); tiny footprint on v5e/v6e/v7x


def _round_up(x, m):
    return ((x + m - 1) // m) * m


# ---------------------------------------------------------------------------
# Fused kernel: the entire MLP for one batch tile.
#   refs = (x, c1, c2, wc1, wc2, w0, b0, w1, b1, ..., wL, bL, out)
# ---------------------------------------------------------------------------
def _fused_mlp_kernel(*refs, n_layers):
    x_ref, c1_ref, c2_ref, wc1_ref, wc2_ref = refs[:5]
    o_ref = refs[-1]
    wb = refs[5:-1]

    # Layer 0:  y = x @ Wx + c1 * wc1 + c2 * wc2 + b0   (concat folded in)
    y = jnp.dot(x_ref[...], wb[0][...], preferred_element_type=jnp.float32)
    y = y + c1_ref[...] * wc1_ref[...]      # (TB,1)*(1,H0) rank-1 broadcast (VPU)
    y = y + c2_ref[...] * wc2_ref[...]
    y = y + wb[1][...]                      # single broadcasted bias add
    y = jnp.maximum(y, 0.0)

    # Remaining layers, statically unrolled; activations stay in VMEM/vregs.
    for li in range(1, n_layers):
        y = jnp.dot(y, wb[2 * li][...], preferred_element_type=jnp.float32)
        y = y + wb[2 * li + 1][...]
        if li == n_layers - 1:
            y = jax.nn.sigmoid(y)           # readout activation
        else:
            y = jnp.maximum(y, 0.0)

    o_ref[...] = y.astype(o_ref.dtype)


# ---------------------------------------------------------------------------
# Parameter init (mimics nn.Linear's U(-1/sqrt(fan_in), 1/sqrt(fan_in))).
# Weights stored (in_dim, out_dim), i.e. transpose of PyTorch's (out, in).
# ---------------------------------------------------------------------------
def init_params(key, input_dim, hidden_dims, output_dim):
    eff_in = input_dim + 2  # +2 for the two conditioning scalars
    dims = [eff_in] + list(hidden_dims) + [output_dim]
    params = []
    for i in range(len(dims) - 1):
        fan_in, fan_out = dims[i], dims[i + 1]
        key, kw, kb = jax.random.split(key, 3)
        bound = 1.0 / jnp.sqrt(float(fan_in))
        w = jax.random.uniform(kw, (fan_in, fan_out), jnp.float32, -bound, bound)
        b = jax.random.uniform(kb, (fan_out,), jnp.float32, -bound, bound)
        params.append((w, b))
    return params


# ---------------------------------------------------------------------------
# One-time prep: split the first layer into (W_x, w_c1, w_c2) and zero-pad all
# feature dims to multiples of 128 so the kernel is lane-dense everywhere.
# ---------------------------------------------------------------------------
def prepare_kernel_params(params, input_dim):
    w0, b0 = params[0]                       # (input_dim + 2, h0)
    h0 = w0.shape[1]
    n0p = _round_up(h0, _LANE)

    wx = jnp.pad(w0[:input_dim], ((0, 0), (0, n0p - h0)))
    wc1 = jnp.pad(w0[input_dim:input_dim + 1], ((0, 0), (0, n0p - h0)))
    wc2 = jnp.pad(w0[input_dim + 1:input_dim + 2], ((0, 0), (0, n0p - h0)))
    b0p = jnp.pad(b0.reshape(1, -1), ((0, 0), (0, n0p - h0)))

    flat = [wx, b0p]
    kp_prev = n0p
    for (w, b) in params[1:]:
        kin, kout = w.shape
        npad = _round_up(kout, _LANE)
        wpad = jnp.pad(w, ((0, kp_prev - kin), (0, npad - kout)))
        bpad = jnp.pad(b.reshape(1, -1), ((0, 0), (0, npad - kout)))
        flat += [wpad, bpad]
        kp_prev = npad

    out_dim = params[-1][1].shape[0]
    return wc1, wc2, flat, out_dim


# ---------------------------------------------------------------------------
# Forward: single fused pallas_call over a batch grid.
# ---------------------------------------------------------------------------
def decoder_mlp_conditional_forward(prepped, X, c1, c2, tb_max=_TB_MAX):
    wc1, wc2, flat_wb, out_dim = prepped
    n_layers = len(flat_wb) // 2

    X = X.astype(jnp.float32)
    c1 = c1.reshape(-1, 1).astype(jnp.float32)
    c2 = c2.reshape(-1, 1).astype(jnp.float32)

    B, din = X.shape
    b8 = _round_up(B, _SUBLANE)
    tb = min(tb_max, b8)
    b_pad = _round_up(B, tb)
    if b_pad != B:
        pad = b_pad - B
        X = jnp.pad(X, ((0, pad), (0, 0)))
        c1 = jnp.pad(c1, ((0, pad), (0, 0)))
        c2 = jnp.pad(c2, ((0, pad), (0, 0)))

    dout_p = flat_wb[-1].shape[-1]
    grid = (b_pad // tb,)

    in_specs = [
        pl.BlockSpec((tb, din), lambda i: (i, 0)),   # X tile
        pl.BlockSpec((tb, 1), lambda i: (i, 0)),     # c1 tile
        pl.BlockSpec((tb, 1), lambda i: (i, 0)),     # c2 tile
        pl.BlockSpec(wc1.shape, lambda i: (0, 0)),   # conditioning rows (resident)
        pl.BlockSpec(wc2.shape, lambda i: (0, 0)),
    ]
    for arr in flat_wb:                              # weights/biases (resident)
        in_specs.append(pl.BlockSpec(arr.shape, lambda i: (0, 0)))
    out_specs = pl.BlockSpec((tb, dout_p), lambda i: (i, 0))

    # Advisory cost estimate for the fused call.
    flops = 2 * b_pad * din * flat_wb[0].shape[-1] + 2 * b_pad * 2 * flat_wb[0].shape[-1]
    for li in range(1, n_layers):
        kdim, ndim = flat_wb[2 * li].shape
        flops += 2 * b_pad * kdim * ndim
    transcendentals = b_pad * dout_p
    bytes_accessed = 4 * int(
        X.size + c1.size + c2.size + wc1.size + wc2.size
        + sum(int(a.size) for a in flat_wb) + b_pad * dout_p
    )

    kernel = functools.partial(_fused_mlp_kernel, n_layers=n_layers)
    out = pl.pallas_call(
        kernel,
        out_shape=jax.ShapeDtypeStruct((b_pad, dout_p), jnp.float32),
        grid=grid,
        in_specs=in_specs,
        out_specs=out_specs,
        compiler_params=pltpu.CompilerParams(dimension_semantics=("parallel",)),
        cost_estimate=pl.CostEstimate(
            flops=int(flops),
            transcendentals=int(transcendentals),
            bytes_accessed=bytes_accessed,
        ),
    )(X, c1, c2, wc1, wc2, *flat_wb)

    return out[:B, :out_dim]


# ---------------------------------------------------------------------------
# Pure-JAX reference (uses the ORIGINAL unpadded/unsplit params).
# ---------------------------------------------------------------------------
def _reference_forward(params, X, c1, c2):
    c1 = c1.reshape(-1, 1)
    c2 = c2.reshape(-1, 1)
    X = jnp.concatenate([X, c1, c2], axis=-1)
    n = len(params)
    for i, (w, b) in enumerate(params):
        X = X @ w + b
        X = jax.nn.sigmoid(X) if i == n - 1 else jnp.maximum(X, 0.0)
    return X


if __name__ == "__main__":
    # Small shapes consistent with the module's forward.
    batch = 8
    input_dim = 6          # latent dim (module adds +2 internally for c1, c2)
    hidden_dims = [32, 32]
    output_dim = 16

    key = jax.random.PRNGKey(0)
    k_params, k_x, k_c1, k_c2 = jax.random.split(key, 4)

    params = init_params(k_params, input_dim, hidden_dims, output_dim)
    prepped = prepare_kernel_params(params, input_dim)

    X = jax.random.normal(k_x, (batch, input_dim), jnp.float32)
    c1 = jax.random.normal(k_c1, (batch,), jnp.float32)
    c2 = jax.random.normal(k_c2, (batch,), jnp.float32)

    out = decoder_mlp_conditional_forward(prepped, X, c1, c2)
    out = jax.block_until_ready(out)

    ref = _reference_forward(params, X, c1, c2)
    assert out.shape == (batch, output_dim)
    assert jnp.allclose(out, ref, atol=1e-5, rtol=1e-5), "mismatch vs reference"

    print("KERNEL_OK")
</pallas_src>

<mosaic_0001>
module attributes {stable_mosaic.version = 11 : i64} {
  func.func @_fused_mlp_kernel(%arg0: i32, %arg1: memref<8x6xf32, #tpu.memory_space<vmem>>, %arg2: memref<8x1xf32, #tpu.memory_space<vmem>>, %arg3: memref<8x1xf32, #tpu.memory_space<vmem>>, %arg4: memref<1x128xf32, #tpu.memory_space<vmem>>, %arg5: memref<1x128xf32, #tpu.memory_space<vmem>>, %arg6: memref<6x128xf32, #tpu.memory_space<vmem>>, %arg7: memref<1x128xf32, #tpu.memory_space<vmem>>, %arg8: memref<128x128xf32, #tpu.memory_space<vmem>>, %arg9: memref<1x128xf32, #tpu.memory_space<vmem>>, %arg10: memref<128x128xf32, #tpu.memory_space<vmem>>, %arg11: memref<1x128xf32, #tpu.memory_space<vmem>>, %arg12: memref<8x128xf32, #tpu.memory_space<vmem>>) attributes {dimension_semantics = [#tpu.dimension_semantics<parallel>], iteration_bounds = array<i64: 1>, scalar_prefetch = 0 : i64, scratch_operands = 0 : i64, tpu.core_type = #tpu.core_type<tc>, window_params = [{transform_indices = @transform_0, window_bounds = array<i64: 8, 6>}, {transform_indices = @transform_1, window_bounds = array<i64: 8, 1>}, {transform_indices = @transform_2, window_bounds = array<i64: 8, 1>}, {pipeline_mode = #tpu.pipeline_mode<synchronous>, transform_indices = @transform_3, window_bounds = array<i64: 1, 128>}, {pipeline_mode = #tpu.pipeline_mode<synchronous>, transform_indices = @transform_4, window_bounds = array<i64: 1, 128>}, {pipeline_mode = #tpu.pipeline_mode<synchronous>, transform_indices = @transform_5, window_bounds = array<i64: 6, 128>}, {pipeline_mode = #tpu.pipeline_mode<synchronous>, transform_indices = @transform_6, window_bounds = array<i64: 1, 128>}, {pipeline_mode = #tpu.pipeline_mode<synchronous>, transform_indices = @transform_7, window_bounds = array<i64: 128, 128>}, {pipeline_mode = #tpu.pipeline_mode<synchronous>, transform_indices = @transform_8, window_bounds = array<i64: 1, 128>}, {pipeline_mode = #tpu.pipeline_mode<synchronous>, transform_indices = @transform_9, window_bounds = array<i64: 128, 128>}, {pipeline_mode = #tpu.pipeline_mode<synchronous>, transform_indices = @transform_10, window_bounds = array<i64: 1, 128>}, {transform_indices = @transform_11, window_bounds = array<i64: 8, 128>}]} {
    %c0 = arith.constant 0 : index
    %c0_0 = arith.constant 0 : index
    %0 = vector.load %arg1[%c0, %c0_0] : memref<8x6xf32, #tpu.memory_space<vmem>>, vector<8x6xf32>
    %c0_1 = arith.constant 0 : index
    %c0_2 = arith.constant 0 : index
    %1 = vector.load %arg6[%c0_1, %c0_2] : memref<6x128xf32, #tpu.memory_space<vmem>>, vector<6x128xf32>
    %cst = arith.constant dense<0.000000e+00> : vector<8x128xf32>
    %2 = tpu.matmul %0, %1, %cst {dimension_numbers = #tpu.dot_dimension_numbers<[1], [0], [0], [1], [0, 0, 1, 1], [], []>} : vector<8x6xf32>, vector<6x128xf32>, vector<8x128xf32> -> vector<8x128xf32>
    %c0_3 = arith.constant 0 : index
    %c0_4 = arith.constant 0 : index
    %3 = vector.load %arg2[%c0_3, %c0_4] : memref<8x1xf32, #tpu.memory_space<vmem>>, vector<8x1xf32>
    %c0_5 = arith.constant 0 : index
    %c0_6 = arith.constant 0 : index
    %4 = vector.load %arg4[%c0_5, %c0_6] : memref<1x128xf32, #tpu.memory_space<vmem>>, vector<1x128xf32>
    %5 = vector.broadcast %3 : vector<8x1xf32> to vector<8x128xf32>
    %6 = vector.broadcast %4 : vector<1x128xf32> to vector<8x128xf32>
    %7 = arith.mulf %5, %6 : vector<8x128xf32>
    %8 = arith.addf %2, %7 : vector<8x128xf32>
    %c0_7 = arith.constant 0 : index
    %c0_8 = arith.constant 0 : index
    %9 = vector.load %arg3[%c0_7, %c0_8] : memref<8x1xf32, #tpu.memory_space<vmem>>, vector<8x1xf32>
    %c0_9 = arith.constant 0 : index
    %c0_10 = arith.constant 0 : index
    %10 = vector.load %arg5[%c0_9, %c0_10] : memref<1x128xf32, #tpu.memory_space<vmem>>, vector<1x128xf32>
    %11 = vector.broadcast %9 : vector<8x1xf32> to vector<8x128xf32>
    %12 = vector.broadcast %10 : vector<1x128xf32> to vector<8x128xf32>
    %13 = arith.mulf %11, %12 : vector<8x128xf32>
    %14 = arith.addf %8, %13 : vector<8x128xf32>
    %c0_11 = arith.constant 0 : index
    %c0_12 = arith.constant 0 : index
    %15 = vector.load %arg7[%c0_11, %c0_12] : memref<1x128xf32, #tpu.memory_space<vmem>>, vector<1x128xf32>
    %16 = vector.broadcast %15 : vector<1x128xf32> to vector<8x128xf32>
    %17 = arith.addf %14, %16 : vector<8x128xf32>
    %cst_13 = arith.constant 0.000000e+00 : f32
    %18 = vector.broadcast %cst_13 : f32 to vector<8x128xf32>
    %19 = arith.maximumf %17, %18 : vector<8x128xf32>
    %c0_14 = arith.constant 0 : index
    %c0_15 = arith.constant 0 : index
    %20 = vector.load %arg8[%c0_14, %c0_15] : memref<128x128xf32, #tpu.memory_space<vmem>>, vector<128x128xf32>
    %cst_16 = arith.constant dense<0.000000e+00> : vector<8x128xf32>
    %21 = tpu.matmul %19, %20, %cst_16 {dimension_numbers = #tpu.dot_dimension_numbers<[1], [0], [0], [1], [0, 0, 1, 1], [], []>} : vector<8x128xf32>, vector<128x128xf32>, vector<8x128xf32> -> vector<8x128xf32>
    %c0_17 = arith.constant 0 : index
    %c0_18 = arith.constant 0 : index
    %22 = vector.load %arg9[%c0_17, %c0_18] : memref<1x128xf32, #tpu.memory_space<vmem>>, vector<1x128xf32>
    %23 = vector.broadcast %22 : vector<1x128xf32> to vector<8x128xf32>
    %24 = arith.addf %21, %23 : vector<8x128xf32>
    %cst_19 = arith.constant 0.000000e+00 : f32
    %25 = vector.broadcast %cst_19 : f32 to vector<8x128xf32>
    %26 = arith.maximumf %24, %25 : vector<8x128xf32>
    %c0_20 = arith.constant 0 : index
    %c0_21 = arith.constant 0 : index
    %27 = vector.load %arg10[%c0_20, %c0_21] : memref<128x128xf32, #tpu.memory_space<vmem>>, vector<128x128xf32>
    %cst_22 = arith.constant dense<0.000000e+00> : vector<8x128xf32>
    %28 = tpu.matmul %26, %27, %cst_22 {dimension_numbers = #tpu.dot_dimension_numbers<[1], [0], [0], [1], [0, 0, 1, 1], [], []>} : vector<8x128xf32>, vector<128x128xf32>, vector<8x128xf32> -> vector<8x128xf32>
    %c0_23 = arith.constant 0 : index
    %c0_24 = arith.constant 0 : index
    %29 = vector.load %arg11[%c0_23, %c0_24] : memref<1x128xf32, #tpu.memory_space<vmem>>, vector<1x128xf32>
    %30 = vector.broadcast %29 : vector<1x128xf32> to vector<8x128xf32>
    %31 = arith.addf %28, %30 : vector<8x128xf32>
    %32 = arith.negf %31 : vector<8x128xf32>
    %33 = math.exp %32 : vector<8x128xf32>
    %cst_25 = arith.constant 1.000000e+00 : f32
    %34 = vector.broadcast %cst_25 : f32 to vector<8x128xf32>
    %35 = arith.addf %34, %33 : vector<8x128xf32>
    %36 = arith.divf %34, %35 : vector<8x128xf32>
    %c0_26 = arith.constant 0 : index
    %c0_27 = arith.constant 0 : index
    %37 = vector.load %arg12[%c0_26, %c0_27] : memref<8x128xf32, #tpu.memory_space<vmem>>, vector<8x128xf32>
    tpu.vector_store %arg12[%c0_26, %c0_27], %36 {strides = array<i32>} : memref<8x128xf32, #tpu.memory_space<vmem>>, vector<8x128xf32>,
    return
  }
  func.func @transform_0(%arg0: i32) -> (i32, i32) {
    %c0_i32 = arith.constant 0 : i32
    %c0_i32_0 = arith.constant 0 : i32
    return %arg0, %c0_i32 : i32, i32
  }
  func.func @transform_1(%arg0: i32) -> (i32, i32) {
    %c0_i32 = arith.constant 0 : i32
    %c0_i32_0 = arith.constant 0 : i32
    return %arg0, %c0_i32 : i32, i32
  }
  func.func @transform_2(%arg0: i32) -> (i32, i32) {
    %c0_i32 = arith.constant 0 : i32
    %c0_i32_0 = arith.constant 0 : i32
    return %arg0, %c0_i32 : i32, i32
  }
  func.func @transform_3(%arg0: i32) -> (i32, i32) {
    %c0_i32 = arith.constant 0 : i32
    %c0_i32_0 = arith.constant 0 : i32
    %c0_i32_1 = arith.constant 0 : i32
    return %c0_i32, %c0_i32_0 : i32, i32
  }
  func.func @transform_4(%arg0: i32) -> (i32, i32) {
    %c0_i32 = arith.constant 0 : i32
    %c0_i32_0 = arith.constant 0 : i32
    %c0_i32_1 = arith.constant 0 : i32
    return %c0_i32, %c0_i32_0 : i32, i32
  }
  func.func @transform_5(%arg0: i32) -> (i32, i32) {
    %c0_i32 = arith.constant 0 : i32
    %c0_i32_0 = arith.constant 0 : i32
    %c0_i32_1 = arith.constant 0 : i32
    return %c0_i32, %c0_i32_0 : i32, i32
  }
  func.func @transform_6(%arg0: i32) -> (i32, i32) {
    %c0_i32 = arith.constant 0 : i32
    %c0_i32_0 = arith.constant 0 : i32
    %c0_i32_1 = arith.constant 0 : i32
    return %c0_i32, %c0_i32_0 : i32, i32
  }
  func.func @transform_7(%arg0: i32) -> (i32, i32) {
    %c0_i32 = arith.constant 0 : i32
    %c0_i32_0 = arith.constant 0 : i32
    %c0_i32_1 = arith.constant 0 : i32
    return %c0_i32, %c0_i32_0 : i32, i32
  }
  func.func @transform_8(%arg0: i32) -> (i32, i32) {
    %c0_i32 = arith.constant 0 : i32
    %c0_i32_0 = arith.constant 0 : i32
    %c0_i32_1 = arith.constant 0 : i32
    return %c0_i32, %c0_i32_0 : i32, i32
  }
  func.func @transform_9(%arg0: i32) -> (i32, i32) {
    %c0_i32 = arith.constant 0 : i32
    %c0_i32_0 = arith.constant 0 : i32
    %c0_i32_1 = arith.constant 0 : i32
    return %c0_i32, %c0_i32_0 : i32, i32
  }
  func.func @transform_10(%arg0: i32) -> (i32, i32) {
    %c0_i32 = arith.constant 0 : i32
    %c0_i32_0 = arith.constant 0 : i32
    %c0_i32_1 = arith.constant 0 : i32
    return %c0_i32, %c0_i32_0 : i32, i32
  }
  func.func @transform_11(%arg0: i32) -> (i32, i32) {
    %c0_i32 = arith.constant 0 : i32
    %c0_i32_0 = arith.constant 0 : i32
    return %arg0, %c0_i32 : i32, i32
  }
}

</mosaic_0001>

<llo_original>
// kernel: tpu_custom_call.1
$region0: #{tpu_custom_call.1}
  #allocation0 [shape = 'u32[]', space=smem, size = 0x4, offset = 0x4, fixed_abs, tag = 'smem constant byte address 0x4 - core index']
  #allocation1 [shape = 'u32[72,128]{1,0:T(1,128)}', space=vmem, size = 0x9000, scoped, tag = 'internal scratch']
  %s0 = inlined_call_operand.vmem [shape: f32[8,6], index: 0, kind: input, shape index: {}]
  %s1 = inlined_call_operand.vmem [shape: f32[8,1], index: 1, kind: input, shape index: {}]
  %s2 = inlined_call_operand.vmem [shape: f32[8,1], index: 2, kind: input, shape index: {}]
  %s3 = inlined_call_operand.vmem [shape: f32[1,128], index: 3, kind: input, shape index: {}]
  %s4 = inlined_call_operand.vmem [shape: f32[1,128], index: 4, kind: input, shape index: {}]
  %s5 = inlined_call_operand.vmem [shape: f32[6,128], index: 5, kind: input, shape index: {}]
  %s6 = inlined_call_operand.vmem [shape: f32[1,128], index: 6, kind: input, shape index: {}]
  %s7 = inlined_call_operand.hbm [shape: f32[128,128], index: 7, kind: input, shape index: {}]
  %s8 = inlined_call_operand.vmem [shape: f32[1,128], index: 8, kind: input, shape index: {}]
  %s9 = inlined_call_operand.hbm [shape: f32[128,128], index: 9, kind: input, shape index: {}]
  %s10 = inlined_call_operand.vmem [shape: f32[1,128], index: 10, kind: input, shape index: {}]
  %s11 = inlined_call_operand.hbm [shape: f32[8,128], index: 11, kind: output, shape index: {}]
  %s12 = sld [smem:[#allocation0]]
  $region62: #{tpu_custom_call.1} parent=0
    _
  %s14 = ssub.s32 1, %s12
  %s15 = scalar_select 0, %s14, %s12
  $region1: #{tpu_custom_call.1} parent=0
    #allocation2 [shape = 'u8[65536]{0}', space=vmem, size = 0x10000, scoped, tag = 'input window, operand 7, single buffered']
    #allocation3 [shape = 's32[1]{0}', space=sflag, size = 0x4, scoped, tag = 'scoped memory for tpu_custom_call.1']
    #allocation4 [shape = 's32[1]{0}', space=sflag, size = 0x4, scoped, tag = 'scoped memory for tpu_custom_call.1']
    #allocation5 [shape = 'u8[65536]{0}', space=vmem, size = 0x10000, scoped, tag = 'input window, operand 9, single buffered']
    #allocation6 [shape = 's32[1]{0}', space=sflag, size = 0x4, scoped, tag = 'scoped memory for tpu_custom_call.1']
    #allocation7 [shape = 'u8[4096]{0}', space=vmem, size = 0x1000, scoped, tag = 'output window, operand 0, single buffered']
    %16 = vsyncpa [#allocation3], 0
    %17 = vsyncpa [#allocation6], 0
    %18 = vsyncpa [#allocation4], 0
    // Predicated region
    $region2: #{tpu_custom_call.1} parent=1 // pred_check
      _
    $region3: #{tpu_custom_call.1} parent=1 // pred_check_branch
      %20 = sbr.rel (0) target = $region5
    $region4: #{tpu_custom_call.1} parent=1 // pred_region
      _
    $region5: #{tpu_custom_call.1} parent=1 // pred_fallthru
      _
    // Predicated region
    $region6: #{tpu_custom_call.1} parent=1 // pred_check
      _
    $region7: #{tpu_custom_call.1} parent=1 // pred_check_branch
      %22 = sbr.rel (0) target = $region9
    $region8: #{tpu_custom_call.1} parent=1 // pred_region
      _
    $region9: #{tpu_custom_call.1} parent=1 // pred_fallthru
      _
    // Predicated region
    $region10: #{tpu_custom_call.1} parent=1 // pred_check
      _
    $region11: #{tpu_custom_call.1} parent=1 // pred_check_branch
      %24 = sbr.rel (0) target = $region13
    $region12: #{tpu_custom_call.1} parent=1 // pred_region
      _
    $region13: #{tpu_custom_call.1} parent=1 // pred_fallthru
      _
    // Predicated region
    $region14: #{tpu_custom_call.1} parent=1 // pred_check
      _
    $region15: #{tpu_custom_call.1} parent=1 // pred_check_branch
      %26 = sbr.rel (0) target = $region17
    $region16: #{tpu_custom_call.1} parent=1 // pred_region
      _
    $region17: #{tpu_custom_call.1} parent=1 // pred_fallthru
      _
    // Predicated region
    $region18: #{tpu_custom_call.1} parent=1 // pred_check
      _
    $region19: #{tpu_custom_call.1} parent=1 // pred_check_branch
      %28 = sbr.rel (0) target = $region21
    $region20: #{tpu_custom_call.1} parent=1 // pred_region
      _
    $region21: #{tpu_custom_call.1} parent=1 // pred_fallthru
      _
    // Predicated region
    $region22: #{tpu_custom_call.1} parent=1 // pred_check
      _
    $region23: #{tpu_custom_call.1} parent=1 // pred_check_branch
      %30 = sbr.rel (0) target = $region25
    $region24: #{tpu_custom_call.1} parent=1 // pred_region
      _
    $region25: #{tpu_custom_call.1} parent=1 // pred_fallthru
      _
    // Predicated region
    $region26: #{tpu_custom_call.1} parent=1 // pred_check
      _
    $region27: #{tpu_custom_call.1} parent=1 // pred_check_branch
      %32 = sbr.rel (0) target = $region29
    $region28: #{tpu_custom_call.1} parent=1 // pred_region
      _
    $region29: #{tpu_custom_call.1} parent=1 // pred_fallthru
      _
    // Predicated region
    $region30: #{tpu_custom_call.1} parent=1 // pred_check
      _
    $region31: #{tpu_custom_call.1} parent=1 // pred_check_branch
      %34 = sbr.rel (0) target = $region33
    $region32: #{tpu_custom_call.1} parent=1 // pred_region
      %36 = vsyncadd [#allocation3], 0
      %s37 = sshll.u32 %s7, 4
      %s38 = int_to_ptr.hbm [resolvable:$true] %s37
      %s39 = sshll.u32 [#allocation2], 4
      %s40 = int_to_ptr.vmem [resolvable:$true] %s39
      %45 = dma.hbm_to_vmem [thread:$0]  %s38, 2048, %s40, [#allocation3], 128, 128, 8
    $region33: #{tpu_custom_call.1} parent=1 // pred_fallthru
      _
    // Predicated region
    $region34: #{tpu_custom_call.1} parent=1 // pred_check
      _
    $region35: #{tpu_custom_call.1} parent=1 // pred_check_branch
      %47 = sbr.rel (0) target = $region37
    $region36: #{tpu_custom_call.1} parent=1 // pred_region
      _
    $region37: #{tpu_custom_call.1} parent=1 // pred_fallthru
      _
    // Predicated region
    $region38: #{tpu_custom_call.1} parent=1 // pred_check
      _
    $region39: #{tpu_custom_call.1} parent=1 // pred_check_branch
      %49 = sbr.rel (0) target = $region41
    $region40: #{tpu_custom_call.1} parent=1 // pred_region
      %51 = vsyncadd [#allocation6], 0
      %s52 = sshll.u32 %s9, 4
      %s53 = int_to_ptr.hbm [resolvable:$true] %s52
      %s54 = sshll.u32 [#allocation5], 4
      %s55 = int_to_ptr.vmem [resolvable:$true] %s54
      %60 = dma.hbm_to_vmem [thread:$0]  %s53, 2048, %s55, [#allocation6], 128, 128, 8
    $region41: #{tpu_custom_call.1} parent=1 // pred_fallthru
      _
    // Predicated region
    $region42: #{tpu_custom_call.1} parent=1 // pred_check
      _
    $region43: #{tpu_custom_call.1} parent=1 // pred_check_branch
      %62 = sbr.rel (0) target = $region45
    $region44: #{tpu_custom_call.1} parent=1 // pred_region
      _
    $region45: #{tpu_custom_call.1} parent=1 // pred_fallthru
      _
    // Predicated region
    $region46: #{tpu_custom_call.1} parent=1 // pred_check
      _
    $region47: #{tpu_custom_call.1} parent=1 // pred_check_branch
      %64 = sbr.rel (0) target = $region49
    $region48: #{tpu_custom_call.1} parent=1 // pred_region
      %66 = dma.done [#allocation3], 2048
    $region49: #{tpu_custom_call.1} parent=1 // pred_fallthru
      _
    // Predicated region
    $region50: #{tpu_custom_call.1} parent=1 // pred_check
      _
    $region51: #{tpu_custom_call.1} parent=1 // pred_check_branch
      %68 = sbr.rel (0) target = $region53
    $region52: #{tpu_custom_call.1} parent=1 // pred_region
      %70 = dma.done [#allocation6], 2048
    $region53: #{tpu_custom_call.1} parent=1 // pred_fallthru
      _
    %v71 = vld [vmem:[%s0] sm:$0xff]
    %v72 = vld [vmem:[%s5] sm:$0x3f]
    %v73 = vld [vmem:[%s1] sm:$0xff]
    %v74 = vld [vmem:[%s3] sm:$0x1]
    %76 = vset.pattern.permute.xlu0 0
    %77 = vperm.xlu0 %76, %v73
    %v78 = vpop.permute.xlu0 %77
    %v81 = vperm.slane %v74, 0
    %v83 = vmul.f32 %v78, %v81
    %vm84 = vcmask 48128
    %v86 = vsel %vm84, %v71, 0
    %vm88 = vcmask 1045504
    %v90 = vsel %vm88, %v72, 0
    %92 = vmatpush.msra.mxu0 0.0
    %93 = vmatpush.msra.mxu0 0.0
    %94 = vmatpush.msra.mxu0 0.0
    %95 = vmatpush.msra.mxu0 0.0
    %96 = vmatpush.msra.mxu0 0.0
    %97 = vmatpush.msra.mxu0 0.0
    %98 = vmatpush.msra.mxu0 0.0
    %99 = vmatpush.msra.mxu0 0.0
    %100 = vmatpush.msra.mxu0 0.0
    %101 = vmatpush.msra.mxu0 0.0
    %102 = vmatpush.msra.mxu0 0.0
    %103 = vmatpush.msra.mxu0 0.0
    %104 = vmatpush.msra.mxu0 0.0
    %105 = vmatpush.msra.mxu0 0.0
    %106 = vmatpush.msra.mxu0 0.0
    %107 = vmatpush.msra.mxu0 %v90
    %108 = vmatmul.f32.gmra.mxu0 %v86
    %v109 = vpop.f32.mrf.mxu0
    %v110 = vadd.f32 %v83, %v109
    %111 = vdwg.mxu0
    %v112 = vld [vmem:[%s2] sm:$0xff]
    %v113 = vld [vmem:[%s4] sm:$0x1]
    %115 = vset.pattern.permute.xlu0 0
    %116 = vperm.xlu0 %115, %v112
    %v117 = vpop.permute.xlu0 %116
    %v120 = vperm.slane %v113, 0
    %v122 = vmul.f32 %v117, %v120
    %v123 = vadd.f32 %v110, %v122
    %v124 = vld [vmem:[%s6] sm:$0x1]
    %v126 = vperm.slane %v124, 0
    %v128 = vadd.f32 %v123, %v126
    %v129 = vmax.f32 %v128, 0.0
    %v130 = vld [vmem:[#allocation2] sm:$0xff]
    %v131 = vld [vmem:[#allocation2 + $0x8] sm:$0xff]
    %v132 = vld [vmem:[#allocation2 + $0x10] sm:$0xff]
    %v133 = vld [vmem:[#allocation2 + $0x18] sm:$0xff]
    %v134 = vld [vmem:[#allocation2 + $0x20] sm:$0xff]
    %v135 = vld [vmem:[#allocation2 + $0x28] sm:$0xff]
    %v136 = vld [vmem:[#allocation2 + $0x30] sm:$0xff]
    %v137 = vld [vmem:[#allocation2 + $0x38] sm:$0xff]
    %v138 = vld [vmem:[#allocation2 + $0x40] sm:$0xff]
    %v139 = vld [vmem:[#allocation2 + $0x48] sm:$0xff]
    %v140 = vld [vmem:[#allocation2 + $0x50] sm:$0xff]
    %v141 = vld [vmem:[#allocation2 + $0x58] sm:$0xff]
    %v142 = vld [vmem:[#allocation2 + $0x60] sm:$0xff]
    %v143 = vld [vmem:[#allocation2 + $0x68] sm:$0xff]
    %v144 = vld [vmem:[#allocation2 + $0x70] sm:$0xff]
    %v145 = vld [vmem:[#allocation2 + $0x78] sm:$0xff]
    %v146 = vld [vmem:[%s8] sm:$0x1]
    %v148 = vperm.slane %v146, 0
    %150 = vmatpush.msra.mxu0 %v145
    %151 = vmatpush.msra.mxu0 %v144
    %152 = vmatpush.msra.mxu0 %v143
    %153 = vmatpush.msra.mxu0 %v142
    %154 = vmatpush.msra.mxu0 %v141
    %155 = vmatpush.msra.mxu0 %v140
    %156 = vmatpush.msra.mxu0 %v139
    %157 = vmatpush.msra.mxu0 %v138
    %158 = vmatpush.msra.mxu0 %v137
    %159 = vmatpush.msra.mxu0 %v136
    %160 = vmatpush.msra.mxu0 %v135
    %161 = vmatpush.msra.mxu0 %v134
    %162 = vmatpush.msra.mxu0 %v133
    %163 = vmatpush.msra.mxu0 %v132
    %164 = vmatpush.msra.mxu0 %v131
    %165 = vmatpush.msra.mxu0 %v130
    %166 = vmatmul.f32.gmra.mxu0 %v129
    %v167 = vpop.f32.mrf.mxu0
    %v168 = vadd.f32 %v148, %v167
    %169 = vdwg.mxu0
    %v170 = vmax.f32 %v168, 0.0
    %v171 = vld [vmem:[#allocation5] sm:$0xff]
    %v172 = vld [vmem:[#allocation5 + $0x8] sm:$0xff]
    %v173 = vld [vmem:[#allocation5 + $0x10] sm:$0xff]
    %v174 = vld [vmem:[#allocation5 + $0x18] sm:$0xff]
    %v175 = vld [vmem:[#allocation5 + $0x20] sm:$0xff]
    %v176 = vld [vmem:[#allocation5 + $0x28] sm:$0xff]
    %v177 = vld [vmem:[#allocation5 + $0x30] sm:$0xff]
    %v178 = vld [vmem:[#allocation5 + $0x38] sm:$0xff]
    %v179 = vld [vmem:[#allocation5 + $0x40] sm:$0xff]
    %v180 = vld [vmem:[#allocation5 + $0x48] sm:$0xff]
    %v181 = vld [vmem:[#allocation5 + $0x50] sm:$0xff]
    %v182 = vld [vmem:[#allocation5 + $0x58] sm:$0xff]
    %v183 = vld [vmem:[#allocation5 + $0x60] sm:$0xff]
    %v184 = vld [vmem:[#allocation5 + $0x68] sm:$0xff]
    %v185 = vld [vmem:[#allocation5 + $0x70] sm:$0xff]
    %v186 = vld [vmem:[#allocation5 + $0x78] sm:$0xff]
    %v187 = vld [vmem:[%s10] sm:$0x1]
    %v189 = vperm.slane %v187, 0
    %191 = vmatpush.msra.mxu0 %v186
    %192 = vmatpush.msra.mxu0 %v185
    %193 = vmatpush.msra.mxu0 %v184
    %194 = vmatpush.msra.mxu0 %v183
    %195 = vmatpush.msra.mxu0 %v182
    %196 = vmatpush.msra.mxu0 %v181
    %197 = vmatpush.msra.mxu0 %v180
    %198 = vmatpush.msra.mxu0 %v179
    %199 = vmatpush.msra.mxu0 %v178
    %200 = vmatpush.msra.mxu0 %v177
    %201 = vmatpush.msra.mxu0 %v176
    %202 = vmatpush.msra.mxu0 %v175
    %203 = vmatpush.msra.mxu0 %v174
    %204 = vmatpush.msra.mxu0 %v173
    %205 = vmatpush.msra.mxu0 %v172
    %206 = vmatpush.msra.mxu0 %v171
    %207 = vmatmul.f32.gmra.mxu0 %v170
    %v208 = vpop.f32.mrf.mxu0
    %v209 = vadd.f32 %v189, %v208
    %210 = vdwg.mxu0
    %v211 = vxor.u32 %v209, 2147483648
    %v212 = vmul.f32 %v211, 1.442695
    %v213 = vpow.pop %v212
    %v214 = vadd.f32 %v213, 1.0
    %v215 = vrcp.pop %v214
    %v216 = vmul.f32 %v214, %v215
    %v217 = vsub.f32 1.0, %v216
    %v218 = vmul.f32 %v215, %v217
    %v219 = vadd.f32 %v215, %v218
    %vm220 = vweird.f32 %v214
    %vm221 = vweird.f32 %v215
    %vm222 = vmor %vm220, %vm221
    %v223 = vsel %vm222, %v215, %v219
    %v224 = vand.u32 2147483647, %v214
    %vm225 = vcmp.eq.f32.partialorder %v224, 8.507059e+37
    %v226 = vand.u32 %v214, 2147483648
    %v227 = vor.u32 1.1754944e-38, %v226
    %v228 = vsel %vm225, %v227, %v223
    %v229 = vmul.f32 1.0, %v228
    %230 = vst [vmem:[#allocation7] sm:$0xff] %v229
    // Predicated region
    $region54: #{tpu_custom_call.1} parent=1 // pred_check
      _
    $region55: #{tpu_custom_call.1} parent=1 // pred_check_branch
      %232 = sbr.rel (0) target = $region57
    $region56: #{tpu_custom_call.1} parent=1 // pred_region
      %234 = vsyncadd [#allocation4], 0
      %s236 = sshll.u32 [#allocation7], 4
      %s237 = int_to_ptr.vmem [resolvable:$true] %s236
      %s238 = sshll.u32 %s11, 4
      %s239 = int_to_ptr.hbm [resolvable:$true] %s238
      %241 = dma.vmem_to_hbm [thread:$0]  %s237, 128, %s239, [#allocation4]
    $region57: #{tpu_custom_call.1} parent=1 // pred_fallthru
      _
    // Predicated region
    $region58: #{tpu_custom_call.1} parent=1 // pred_check
      _
    $region59: #{tpu_custom_call.1} parent=1 // pred_check_branch
      %243 = sbr.rel (0) target = $region61
    $region60: #{tpu_custom_call.1} parent=1 // pred_region
      %245 = dma.done [#allocation4], 128
    $region61: #{tpu_custom_call.1} parent=1 // pred_fallthru
      _
    %246 = vsyncpa [#allocation3], 1
    %247 = vsyncpa [#allocation6], 1
    %248 = vsyncpa [#allocation4], 1

</llo_original>
